<compile_context>
chip_gen: v5e
topology: v5e:2x2
jax: 0.10.0
libtpu: 0.0.40
codegen_flags: <defaults>
</compile_context>

<pallas_src>
import functools

import jax
import jax.numpy as jnp
from jax import lax
from jax.experimental import pallas as pl
from jax.experimental.pallas import tpu as pltpu

BN_EPS = 1e-5


def _bn_train(h, gamma, beta):
    """BatchNorm1d (training mode). Mean and E[h^2] come from a single fused
    cross-sublane reduction over concat([h, h*h]); biased variance, clamped >= 0."""
    n, f = h.shape
    sums = jnp.sum(jnp.concatenate([h, h * h], axis=-1), axis=0, keepdims=True) * (1.0 / float(n))
    mu = sums[:, :f]
    ex2 = sums[:, f:]
    var = jnp.maximum(ex2 - mu * mu, 0.0)   # clamp: single-pass var can go slightly negative
    return (h - mu) * lax.rsqrt(var + BN_EPS) * gamma + beta


def vicreg_fused_kernel(x_ref, y_ref, bn_ref,
                        xt_w_ref, yt_w_ref, p_w1_ref, p_w2_ref,
                        out_ref,
                        *, batch_size, sim_coeff, std_coeff, cov_coeff):
    """Both branches + shared projector + VICReg loss in one kernel.
    out_ref: SMEM (4,) = [loss, repr_loss, std_loss, cov_loss]."""
    mm_dtype = xt_w_ref.dtype           # matmul dtype (bf16), f32 accumulation everywhere

    x = x_ref[...].astype(jnp.float32)
    y = y_ref[...].astype(jnp.float32)
    bn = bn_ref[...]                    # (10, Fmax) packed gamma/beta rows, f32

    B, Fx = x.shape
    _, Fy = y.shape
    Dt = xt_w_ref.shape[1]
    F1 = p_w1_ref.shape[1]
    F2 = p_w2_ref.shape[1]              # == num_features

    # ---- x_transform: BN -> Linear(no bias; cancels under BN) -> BN -> ReLU ----
    h = _bn_train(x, bn[0:1, :Fx], bn[1:2, :Fx])
    h = jnp.dot(h.astype(mm_dtype), xt_w_ref[...], preferred_element_type=jnp.float32)
    x_rep = jnp.maximum(_bn_train(h, bn[4:5, :Dt], bn[5:6, :Dt]), 0.0)

    # ---- y_transform ----
    h = _bn_train(y, bn[2:3, :Fy], bn[3:4, :Fy])
    h = jnp.dot(h.astype(mm_dtype), yt_w_ref[...], preferred_element_type=jnp.float32)
    y_rep = jnp.maximum(_bn_train(h, bn[6:7, :Dt], bn[7:8, :Dt]), 0.0)

    # identity backbone: representation == transform output   # TODO(synk): real backbone

    # ---- shared projector on the concatenated batch (one MXU pass per Linear);
    #      BatchNorm statistics are computed PER BRANCH (two separate module calls) ----
    rep = jnp.concatenate([x_rep, y_rep], axis=0)                                       # (2B, Dt)
    h = jnp.dot(rep.astype(mm_dtype), p_w1_ref[...], preferred_element_type=jnp.float32)  # (2B, F1)
    hx = jnp.maximum(_bn_train(h[:B], bn[8:9, :F1], bn[9:10, :F1]), 0.0)
    hy = jnp.maximum(_bn_train(h[B:], bn[8:9, :F1], bn[9:10, :F1]), 0.0)
    h = jnp.concatenate([hx, hy], axis=0)                                               # (2B, F1)
    emb = jnp.dot(h.astype(mm_dtype), p_w2_ref[...], preferred_element_type=jnp.float32)  # (2B, F2)
    x_emb = emb[:B]
    y_emb = emb[B:]

    # ---- VICReg loss (all reductions in f32) ----
    # repr_loss = F.mse_loss(x_emb, y_emb)
    d = x_emb - y_emb
    repr_loss = jnp.sum(d * d) * (1.0 / float(B * F2))

    # center over batch
    xc = x_emb - jnp.mean(x_emb, axis=0, keepdims=True)
    yc = y_emb - jnp.mean(y_emb, axis=0, keepdims=True)

    # per-feature sums of squares == diag(xc.T @ xc); reused for std AND cov diagonal
    sumsq_x = jnp.sum(xc * xc, axis=0, keepdims=True)   # (1, F2)
    sumsq_y = jnp.sum(yc * yc, axis=0, keepdims=True)

    # std loss (torch.var is unbiased -> divide by B-1)
    std_x = jnp.sqrt(sumsq_x * (1.0 / float(B - 1)) + 1e-4)
    std_y = jnp.sqrt(sumsq_y * (1.0 / float(B - 1)) + 1e-4)
    std_loss = (jnp.sum(jnp.maximum(1.0 - std_x, 0.0)) +
                jnp.sum(jnp.maximum(1.0 - std_y, 0.0))) * (0.5 / float(F2))

    # cov loss via the B x B Gram matrix (trace identity); contract the feature (lane)
    # axis of both operands -> no cross-sublane transpose of the centered embeddings.
    dn = (((1,), (1,)), ((), ()))
    gx = lax.dot_general(xc, xc, dn, preferred_element_type=jnp.float32)   # (B, B) f32
    gy = lax.dot_general(yc, yc, dn, preferred_element_type=jnp.float32)
    inv_bm1 = 1.0 / float(batch_size - 1)
    inv2 = inv_bm1 * inv_bm1
    frob_x = jnp.sum(gx * gx) * inv2                 # ||cov_x||_F^2
    frob_y = jnp.sum(gy * gy) * inv2
    diag_x = jnp.sum(sumsq_x * sumsq_x) * inv2       # sum(diag(cov_x)^2)
    diag_y = jnp.sum(sumsq_y * sumsq_y) * inv2
    cov_loss = ((frob_x - diag_x) + (frob_y - diag_y)) * (1.0 / float(F2))

    loss = sim_coeff * repr_loss + std_coeff * std_loss + cov_coeff * cov_loss

    out_ref[0] = loss
    out_ref[1] = repr_loss
    out_ref[2] = std_loss
    out_ref[3] = cov_loss


def init_params(key, x_inputs, y_inputs, transform_inputs, mlp_spec):
    """Deterministic parameter init. Projector is shared (args.shared=True).
    Linear biases that sit directly in front of a BatchNorm are omitted: they
    cancel exactly under batch-mean subtraction."""
    embedding = transform_inputs  # identity backbone: Do == transform_inputs
    f = [embedding] + list(map(int, mlp_spec.split('-')))
    assert len(f) == 3, "small demo projector: Linear+BN+ReLU, Linear(no bias)"

    ks = jax.random.split(key, 4)
    p = {}

    def lin(k, din, dout, scale=0.1):
        return jax.random.normal(k, (din, dout), jnp.float32) * scale

    # x_transform
    p['xt_bn0_g'] = jnp.ones((1, x_inputs), jnp.float32)
    p['xt_bn0_b'] = jnp.zeros((1, x_inputs), jnp.float32)
    p['xt_w'] = lin(ks[0], x_inputs, transform_inputs)
    p['xt_bn1_g'] = jnp.ones((1, transform_inputs), jnp.float32)
    p['xt_bn1_b'] = jnp.zeros((1, transform_inputs), jnp.float32)

    # y_transform
    p['yt_bn0_g'] = jnp.ones((1, y_inputs), jnp.float32)
    p['yt_bn0_b'] = jnp.zeros((1, y_inputs), jnp.float32)
    p['yt_w'] = lin(ks[1], y_inputs, transform_inputs)
    p['yt_bn1_g'] = jnp.ones((1, transform_inputs), jnp.float32)
    p['yt_bn1_b'] = jnp.zeros((1, transform_inputs), jnp.float32)

    # shared projector: Linear(f0,f1)+BN+ReLU, Linear(f1,f2, no bias)
    p['p_w1'] = lin(ks[2], f[0], f[1])
    p['p_bn_g'] = jnp.ones((1, f[1]), jnp.float32)
    p['p_bn_b'] = jnp.zeros((1, f[1]), jnp.float32)
    p['p_w2'] = lin(ks[3], f[1], f[2])
    return p


def vicreg_forward(x, y, params, *, sim_coeff=25.0, std_coeff=25.0, cov_coeff=1.0,
                   matmul_dtype=jnp.bfloat16):
    B = x.shape[0]
    assert B > 1, "VICReg std/cov terms divide by (batch_size - 1)"
    Fx, Fy = x.shape[1], y.shape[1]
    Dt = params['xt_w'].shape[1]
    F1 = params['p_w1'].shape[1]

    # Pack the 10 tiny (1, F) BN gamma/beta vectors into ONE (10, Fmax) VMEM input
    # (one DMA / one padded tile instead of ~10).
    Fmax = max(Fx, Fy, Dt, F1)

    def _row(v):
        v = v.reshape(1, -1).astype(jnp.float32)
        return jnp.pad(v, ((0, 0), (0, Fmax - v.shape[1])))

    bn_pack = jnp.concatenate(
        [_row(params[k]) for k in ('xt_bn0_g', 'xt_bn0_b', 'yt_bn0_g', 'yt_bn0_b',
                                   'xt_bn1_g', 'xt_bn1_b', 'yt_bn1_g', 'yt_bn1_b',
                                   'p_bn_g', 'p_bn_b')],
        axis=0)                                           # (10, Fmax)

    wd = matmul_dtype
    args_list = [
        x.astype(jnp.float32), y.astype(jnp.float32), bn_pack,
        params['xt_w'].astype(wd), params['yt_w'].astype(wd),
        params['p_w1'].astype(wd), params['p_w2'].astype(wd),
    ]

    kernel = functools.partial(
        vicreg_fused_kernel,
        batch_size=B,
        sim_coeff=float(sim_coeff), std_coeff=float(std_coeff), cov_coeff=float(cov_coeff))

    vmem = pl.BlockSpec(memory_space=pltpu.MemorySpace.VMEM)
    smem = pl.BlockSpec(memory_space=pltpu.MemorySpace.SMEM)

    # TODO(synk): for real shapes (B~2048, Fd~8192): grid the batch axis ("parallel"
    # leading axis so v7x's 2 TCs split it), emit per-block partial sums (repr SSE,
    # per-feature sumsq, BxB Gram partials) and combine on a trailing "arbitrary" axis;
    # pad feature dims to multiples of 128 lanes; re-derive tile sizes for v7x's 64 MiB
    # VMEM vs 128 MiB on v5e/v6e. At demo shapes a single fused VMEM-resident call wins.
    out = pl.pallas_call(
        kernel,
        out_shape=jax.ShapeDtypeStruct((4,), jnp.float32),
        in_specs=[vmem] * len(args_list),
        out_specs=smem,
    )(*args_list)

    return out[0], out[1], out[2], out[3]


if __name__ == "__main__":
    key = jax.random.PRNGKey(0)
    kx, ky, kp = jax.random.split(key, 3)

    # small shapes consistent with the module's forward
    B = 8                   # args.batch_size
    x_inputs = 16           # args.x_inputs
    y_inputs = 16           # args.y_inputs
    transform_inputs = 32   # args.transform_inputs (== Do with identity backbone)
    mlp = "32-32"           # args.mlp -> num_features = 32

    x = jax.random.normal(kx, (B, x_inputs), jnp.float32)
    y = jax.random.normal(ky, (B, y_inputs), jnp.float32)
    params = init_params(kp, x_inputs, y_inputs, transform_inputs, mlp)

    outs = vicreg_forward(x, y, params)
    outs = jax.block_until_ready(outs)
    loss, repr_loss, std_loss, cov_loss = [float(o) for o in outs]
    assert all(jnp.isfinite(jnp.asarray([loss, repr_loss, std_loss, cov_loss])))
    print("KERNEL_OK")
</pallas_src>

<mosaic_0001>
module attributes {stable_mosaic.version = 11 : i64} {
  func.func @vicreg_fused_kernel(%arg0: memref<8x16xf32, #tpu.memory_space<vmem>>, %arg1: memref<8x16xf32, #tpu.memory_space<vmem>>, %arg2: memref<10x32xf32, #tpu.memory_space<vmem>>, %arg3: memref<16x32xbf16, #tpu.memory_space<vmem>>, %arg4: memref<16x32xbf16, #tpu.memory_space<vmem>>, %arg5: memref<32x32xbf16, #tpu.memory_space<vmem>>, %arg6: memref<32x32xbf16, #tpu.memory_space<vmem>>, %arg7: memref<4xf32, #tpu.memory_space<smem>>) attributes {dimension_semantics = [], scalar_prefetch = 0 : i64, scratch_operands = 0 : i64, tpu.core_type = #tpu.core_type<tc>} {
    %c0 = arith.constant 0 : index
    %c0_0 = arith.constant 0 : index
    %0 = vector.load %arg0[%c0, %c0_0] : memref<8x16xf32, #tpu.memory_space<vmem>>, vector<8x16xf32>
    %c0_1 = arith.constant 0 : index
    %c0_2 = arith.constant 0 : index
    %1 = vector.load %arg1[%c0_1, %c0_2] : memref<8x16xf32, #tpu.memory_space<vmem>>, vector<8x16xf32>
    %c0_3 = arith.constant 0 : index
    %c0_4 = arith.constant 0 : index
    %2 = vector.load %arg2[%c0_3, %c0_4] : memref<10x32xf32, #tpu.memory_space<vmem>>, vector<10x32xf32>
    %3 = vector.extract_strided_slice %2 {offsets = [0, 0], sizes = [1, 16], strides = [1, 1]} : vector<10x32xf32> to vector<1x16xf32>
    %4 = vector.extract_strided_slice %2 {offsets = [1, 0], sizes = [1, 16], strides = [1, 1]} : vector<10x32xf32> to vector<1x16xf32>
    %5 = arith.mulf %0, %0 : vector<8x16xf32>
    %6 = tpu.concatenate %0, %5 in 1 : vector<8x16xf32>, vector<8x16xf32> -> vector<8x32xf32>
    %cst = arith.constant dense<0.000000e+00> : vector<32xf32>
    %7 = vector.multi_reduction <add>, %6, %cst [0] : vector<8x32xf32> to vector<32xf32>
    %8 = vector.shape_cast %7 : vector<32xf32> to vector<1x32xf32>
    %cst_5 = arith.constant 1.250000e-01 : f32
    %9 = vector.broadcast %cst_5 : f32 to vector<1x32xf32>
    %10 = arith.mulf %8, %9 : vector<1x32xf32>
    %11 = vector.extract_strided_slice %10 {offsets = [0, 0], sizes = [1, 16], strides = [1, 1]} : vector<1x32xf32> to vector<1x16xf32>
    %12 = vector.extract_strided_slice %10 {offsets = [0, 16], sizes = [1, 16], strides = [1, 1]} : vector<1x32xf32> to vector<1x16xf32>
    %13 = arith.mulf %11, %11 : vector<1x16xf32>
    %14 = arith.subf %12, %13 : vector<1x16xf32>
    %cst_6 = arith.constant 0.000000e+00 : f32
    %15 = vector.broadcast %cst_6 : f32 to vector<1x16xf32>
    %16 = arith.maximumf %14, %15 : vector<1x16xf32>
    %17 = vector.broadcast %11 : vector<1x16xf32> to vector<8x16xf32>
    %18 = arith.subf %0, %17 : vector<8x16xf32>
    %cst_7 = arith.constant 9.99999974E-6 : f32
    %19 = vector.broadcast %cst_7 : f32 to vector<1x16xf32>
    %20 = arith.addf %16, %19 : vector<1x16xf32>
    %21 = math.rsqrt %20 : vector<1x16xf32>
    %22 = vector.broadcast %21 : vector<1x16xf32> to vector<8x16xf32>
    %23 = arith.mulf %18, %22 : vector<8x16xf32>
    %24 = vector.broadcast %3 : vector<1x16xf32> to vector<8x16xf32>
    %25 = arith.mulf %23, %24 : vector<8x16xf32>
    %26 = vector.broadcast %4 : vector<1x16xf32> to vector<8x16xf32>
    %27 = arith.addf %25, %26 : vector<8x16xf32>
    %28 = arith.truncf %27 : vector<8x16xf32> to vector<8x16xbf16>
    %c0_8 = arith.constant 0 : index
    %c0_9 = arith.constant 0 : index
    %29 = vector.load %arg3[%c0_8, %c0_9] : memref<16x32xbf16, #tpu.memory_space<vmem>>, vector<16x32xbf16>
    %cst_10 = arith.constant dense<0.000000e+00> : vector<8x32xf32>
    %30 = tpu.matmul %28, %29, %cst_10 {dimension_numbers = #tpu.dot_dimension_numbers<[1], [0], [0], [1], [0, 0, 1, 1], [], []>} : vector<8x16xbf16>, vector<16x32xbf16>, vector<8x32xf32> -> vector<8x32xf32>
    %31 = vector.extract_strided_slice %2 {offsets = [4, 0], sizes = [1, 32], strides = [1, 1]} : vector<10x32xf32> to vector<1x32xf32>
    %32 = vector.extract_strided_slice %2 {offsets = [5, 0], sizes = [1, 32], strides = [1, 1]} : vector<10x32xf32> to vector<1x32xf32>
    %33 = arith.mulf %30, %30 : vector<8x32xf32>
    %34 = tpu.concatenate %30, %33 in 1 : vector<8x32xf32>, vector<8x32xf32> -> vector<8x64xf32>
    %cst_11 = arith.constant dense<0.000000e+00> : vector<64xf32>
    %35 = vector.multi_reduction <add>, %34, %cst_11 [0] : vector<8x64xf32> to vector<64xf32>
    %36 = vector.shape_cast %35 : vector<64xf32> to vector<1x64xf32>
    %cst_12 = arith.constant 1.250000e-01 : f32
    %37 = vector.broadcast %cst_12 : f32 to vector<1x64xf32>
    %38 = arith.mulf %36, %37 : vector<1x64xf32>
    %39 = vector.extract_strided_slice %38 {offsets = [0, 0], sizes = [1, 32], strides = [1, 1]} : vector<1x64xf32> to vector<1x32xf32>
    %40 = vector.extract_strided_slice %38 {offsets = [0, 32], sizes = [1, 32], strides = [1, 1]} : vector<1x64xf32> to vector<1x32xf32>
    %41 = arith.mulf %39, %39 : vector<1x32xf32>
    %42 = arith.subf %40, %41 : vector<1x32xf32>
    %cst_13 = arith.constant 0.000000e+00 : f32
    %43 = vector.broadcast %cst_13 : f32 to vector<1x32xf32>
    %44 = arith.maximumf %42, %43 : vector<1x32xf32>
    %45 = vector.broadcast %39 : vector<1x32xf32> to vector<8x32xf32>
    %46 = arith.subf %30, %45 : vector<8x32xf32>
    %cst_14 = arith.constant 9.99999974E-6 : f32
    %47 = vector.broadcast %cst_14 : f32 to vector<1x32xf32>
    %48 = arith.addf %44, %47 : vector<1x32xf32>
    %49 = math.rsqrt %48 : vector<1x32xf32>
    %50 = vector.broadcast %49 : vector<1x32xf32> to vector<8x32xf32>
    %51 = arith.mulf %46, %50 : vector<8x32xf32>
    %52 = vector.broadcast %31 : vector<1x32xf32> to vector<8x32xf32>
    %53 = arith.mulf %51, %52 : vector<8x32xf32>
    %54 = vector.broadcast %32 : vector<1x32xf32> to vector<8x32xf32>
    %55 = arith.addf %53, %54 : vector<8x32xf32>
    %cst_15 = arith.constant 0.000000e+00 : f32
    %56 = vector.broadcast %cst_15 : f32 to vector<8x32xf32>
    %57 = arith.maximumf %55, %56 : vector<8x32xf32>
    %58 = vector.extract_strided_slice %2 {offsets = [2, 0], sizes = [1, 16], strides = [1, 1]} : vector<10x32xf32> to vector<1x16xf32>
    %59 = vector.extract_strided_slice %2 {offsets = [3, 0], sizes = [1, 16], strides = [1, 1]} : vector<10x32xf32> to vector<1x16xf32>
    %60 = arith.mulf %1, %1 : vector<8x16xf32>
    %61 = tpu.concatenate %1, %60 in 1 : vector<8x16xf32>, vector<8x16xf32> -> vector<8x32xf32>
    %cst_16 = arith.constant dense<0.000000e+00> : vector<32xf32>
    %62 = vector.multi_reduction <add>, %61, %cst_16 [0] : vector<8x32xf32> to vector<32xf32>
    %63 = vector.shape_cast %62 : vector<32xf32> to vector<1x32xf32>
    %cst_17 = arith.constant 1.250000e-01 : f32
    %64 = vector.broadcast %cst_17 : f32 to vector<1x32xf32>
    %65 = arith.mulf %63, %64 : vector<1x32xf32>
    %66 = vector.extract_strided_slice %65 {offsets = [0, 0], sizes = [1, 16], strides = [1, 1]} : vector<1x32xf32> to vector<1x16xf32>
    %67 = vector.extract_strided_slice %65 {offsets = [0, 16], sizes = [1, 16], strides = [1, 1]} : vector<1x32xf32> to vector<1x16xf32>
    %68 = arith.mulf %66, %66 : vector<1x16xf32>
    %69 = arith.subf %67, %68 : vector<1x16xf32>
    %cst_18 = arith.constant 0.000000e+00 : f32
    %70 = vector.broadcast %cst_18 : f32 to vector<1x16xf32>
    %71 = arith.maximumf %69, %70 : vector<1x16xf32>
    %72 = vector.broadcast %66 : vector<1x16xf32> to vector<8x16xf32>
    %73 = arith.subf %1, %72 : vector<8x16xf32>
    %cst_19 = arith.constant 9.99999974E-6 : f32
    %74 = vector.broadcast %cst_19 : f32 to vector<1x16xf32>
    %75 = arith.addf %71, %74 : vector<1x16xf32>
    %76 = math.rsqrt %75 : vector<1x16xf32>
    %77 = vector.broadcast %76 : vector<1x16xf32> to vector<8x16xf32>
    %78 = arith.mulf %73, %77 : vector<8x16xf32>
    %79 = vector.broadcast %58 : vector<1x16xf32> to vector<8x16xf32>
    %80 = arith.mulf %78, %79 : vector<8x16xf32>
    %81 = vector.broadcast %59 : vector<1x16xf32> to vector<8x16xf32>
    %82 = arith.addf %80, %81 : vector<8x16xf32>
    %83 = arith.truncf %82 : vector<8x16xf32> to vector<8x16xbf16>
    %c0_20 = arith.constant 0 : index
    %c0_21 = arith.constant 0 : index
    %84 = vector.load %arg4[%c0_20, %c0_21] : memref<16x32xbf16, #tpu.memory_space<vmem>>, vector<16x32xbf16>
    %cst_22 = arith.constant dense<0.000000e+00> : vector<8x32xf32>
    %85 = tpu.matmul %83, %84, %cst_22 {dimension_numbers = #tpu.dot_dimension_numbers<[1], [0], [0], [1], [0, 0, 1, 1], [], []>} : vector<8x16xbf16>, vector<16x32xbf16>, vector<8x32xf32> -> vector<8x32xf32>
    %86 = vector.extract_strided_slice %2 {offsets = [6, 0], sizes = [1, 32], strides = [1, 1]} : vector<10x32xf32> to vector<1x32xf32>
    %87 = vector.extract_strided_slice %2 {offsets = [7, 0], sizes = [1, 32], strides = [1, 1]} : vector<10x32xf32> to vector<1x32xf32>
    %88 = arith.mulf %85, %85 : vector<8x32xf32>
    %89 = tpu.concatenate %85, %88 in 1 : vector<8x32xf32>, vector<8x32xf32> -> vector<8x64xf32>
    %cst_23 = arith.constant dense<0.000000e+00> : vector<64xf32>
    %90 = vector.multi_reduction <add>, %89, %cst_23 [0] : vector<8x64xf32> to vector<64xf32>
    %91 = vector.shape_cast %90 : vector<64xf32> to vector<1x64xf32>
    %cst_24 = arith.constant 1.250000e-01 : f32
    %92 = vector.broadcast %cst_24 : f32 to vector<1x64xf32>
    %93 = arith.mulf %91, %92 : vector<1x64xf32>
    %94 = vector.extract_strided_slice %93 {offsets = [0, 0], sizes = [1, 32], strides = [1, 1]} : vector<1x64xf32> to vector<1x32xf32>
    %95 = vector.extract_strided_slice %93 {offsets = [0, 32], sizes = [1, 32], strides = [1, 1]} : vector<1x64xf32> to vector<1x32xf32>
    %96 = arith.mulf %94, %94 : vector<1x32xf32>
    %97 = arith.subf %95, %96 : vector<1x32xf32>
    %cst_25 = arith.constant 0.000000e+00 : f32
    %98 = vector.broadcast %cst_25 : f32 to vector<1x32xf32>
    %99 = arith.maximumf %97, %98 : vector<1x32xf32>
    %100 = vector.broadcast %94 : vector<1x32xf32> to vector<8x32xf32>
    %101 = arith.subf %85, %100 : vector<8x32xf32>
    %cst_26 = arith.constant 9.99999974E-6 : f32
    %102 = vector.broadcast %cst_26 : f32 to vector<1x32xf32>
    %103 = arith.addf %99, %102 : vector<1x32xf32>
    %104 = math.rsqrt %103 : vector<1x32xf32>
    %105 = vector.broadcast %104 : vector<1x32xf32> to vector<8x32xf32>
    %106 = arith.mulf %101, %105 : vector<8x32xf32>
    %107 = vector.broadcast %86 : vector<1x32xf32> to vector<8x32xf32>
    %108 = arith.mulf %106, %107 : vector<8x32xf32>
    %109 = vector.broadcast %87 : vector<1x32xf32> to vector<8x32xf32>
    %110 = arith.addf %108, %109 : vector<8x32xf32>
    %cst_27 = arith.constant 0.000000e+00 : f32
    %111 = vector.broadcast %cst_27 : f32 to vector<8x32xf32>
    %112 = arith.maximumf %110, %111 : vector<8x32xf32>
    %113 = tpu.concatenate %57, %112 in 0 : vector<8x32xf32>, vector<8x32xf32> -> vector<16x32xf32>
    %114 = arith.truncf %113 : vector<16x32xf32> to vector<16x32xbf16>
    %c0_28 = arith.constant 0 : index
    %c0_29 = arith.constant 0 : index
    %115 = vector.load %arg5[%c0_28, %c0_29] : memref<32x32xbf16, #tpu.memory_space<vmem>>, vector<32x32xbf16>
    %cst_30 = arith.constant dense<0.000000e+00> : vector<16x32xf32>
    %116 = tpu.matmul %114, %115, %cst_30 {dimension_numbers = #tpu.dot_dimension_numbers<[1], [0], [0], [1], [0, 0, 1, 1], [], []>} : vector<16x32xbf16>, vector<32x32xbf16>, vector<16x32xf32> -> vector<16x32xf32>
    %117 = vector.extract_strided_slice %116 {offsets = [0, 0], sizes = [8, 32], strides = [1, 1]} : vector<16x32xf32> to vector<8x32xf32>
    %118 = vector.extract_strided_slice %2 {offsets = [8, 0], sizes = [1, 32], strides = [1, 1]} : vector<10x32xf32> to vector<1x32xf32>
    %119 = vector.extract_strided_slice %2 {offsets = [9, 0], sizes = [1, 32], strides = [1, 1]} : vector<10x32xf32> to vector<1x32xf32>
    %120 = arith.mulf %117, %117 : vector<8x32xf32>
    %121 = tpu.concatenate %117, %120 in 1 : vector<8x32xf32>, vector<8x32xf32> -> vector<8x64xf32>
    %cst_31 = arith.constant dense<0.000000e+00> : vector<64xf32>
    %122 = vector.multi_reduction <add>, %121, %cst_31 [0] : vector<8x64xf32> to vector<64xf32>
    %123 = vector.shape_cast %122 : vector<64xf32> to vector<1x64xf32>
    %cst_32 = arith.constant 1.250000e-01 : f32
    %124 = vector.broadcast %cst_32 : f32 to vector<1x64xf32>
    %125 = arith.mulf %123, %124 : vector<1x64xf32>
    %126 = vector.extract_strided_slice %125 {offsets = [0, 0], sizes = [1, 32], strides = [1, 1]} : vector<1x64xf32> to vector<1x32xf32>
    %127 = vector.extract_strided_slice %125 {offsets = [0, 32], sizes = [1, 32], strides = [1, 1]} : vector<1x64xf32> to vector<1x32xf32>
    %128 = arith.mulf %126, %126 : vector<1x32xf32>
    %129 = arith.subf %127, %128 : vector<1x32xf32>
    %cst_33 = arith.constant 0.000000e+00 : f32
    %130 = vector.broadcast %cst_33 : f32 to vector<1x32xf32>
    %131 = arith.maximumf %129, %130 : vector<1x32xf32>
    %132 = vector.broadcast %126 : vector<1x32xf32> to vector<8x32xf32>
    %133 = arith.subf %117, %132 : vector<8x32xf32>
    %cst_34 = arith.constant 9.99999974E-6 : f32
    %134 = vector.broadcast %cst_34 : f32 to vector<1x32xf32>
    %135 = arith.addf %131, %134 : vector<1x32xf32>
    %136 = math.rsqrt %135 : vector<1x32xf32>
    %137 = vector.broadcast %136 : vector<1x32xf32> to vector<8x32xf32>
    %138 = arith.mulf %133, %137 : vector<8x32xf32>
    %139 = vector.broadcast %118 : vector<1x32xf32> to vector<8x32xf32>
    %140 = arith.mulf %138, %139 : vector<8x32xf32>
    %141 = vector.broadcast %119 : vector<1x32xf32> to vector<8x32xf32>
    %142 = arith.addf %140, %141 : vector<8x32xf32>
    %cst_35 = arith.constant 0.000000e+00 : f32
    %143 = vector.broadcast %cst_35 : f32 to vector<8x32xf32>
    %144 = arith.maximumf %142, %143 : vector<8x32xf32>
    %145 = vector.extract_strided_slice %116 {offsets = [8, 0], sizes = [8, 32], strides = [1, 1]} : vector<16x32xf32> to vector<8x32xf32>
    %146 = vector.extract_strided_slice %2 {offsets = [8, 0], sizes = [1, 32], strides = [1, 1]} : vector<10x32xf32> to vector<1x32xf32>
    %147 = vector.extract_strided_slice %2 {offsets = [9, 0], sizes = [1, 32], strides = [1, 1]} : vector<10x32xf32> to vector<1x32xf32>
    %148 = arith.mulf %145, %145 : vector<8x32xf32>
    %149 = tpu.concatenate %145, %148 in 1 : vector<8x32xf32>, vector<8x32xf32> -> vector<8x64xf32>
    %cst_36 = arith.constant dense<0.000000e+00> : vector<64xf32>
    %150 = vector.multi_reduction <add>, %149, %cst_36 [0] : vector<8x64xf32> to vector<64xf32>
    %151 = vector.shape_cast %150 : vector<64xf32> to vector<1x64xf32>
    %cst_37 = arith.constant 1.250000e-01 : f32
    %152 = vector.broadcast %cst_37 : f32 to vector<1x64xf32>
    %153 = arith.mulf %151, %152 : vector<1x64xf32>
    %154 = vector.extract_strided_slice %153 {offsets = [0, 0], sizes = [1, 32], strides = [1, 1]} : vector<1x64xf32> to vector<1x32xf32>
    %155 = vector.extract_strided_slice %153 {offsets = [0, 32], sizes = [1, 32], strides = [1, 1]} : vector<1x64xf32> to vector<1x32xf32>
    %156 = arith.mulf %154, %154 : vector<1x32xf32>
    %157 = arith.subf %155, %156 : vector<1x32xf32>
    %cst_38 = arith.constant 0.000000e+00 : f32
    %158 = vector.broadcast %cst_38 : f32 to vector<1x32xf32>
    %159 = arith.maximumf %157, %158 : vector<1x32xf32>
    %160 = vector.broadcast %154 : vector<1x32xf32> to vector<8x32xf32>
    %161 = arith.subf %145, %160 : vector<8x32xf32>
    %cst_39 = arith.constant 9.99999974E-6 : f32
    %162 = vector.broadcast %cst_39 : f32 to vector<1x32xf32>
    %163 = arith.addf %159, %162 : vector<1x32xf32>
    %164 = math.rsqrt %163 : vector<1x32xf32>
    %165 = vector.broadcast %164 : vector<1x32xf32> to vector<8x32xf32>
    %166 = arith.mulf %161, %165 : vector<8x32xf32>
    %167 = vector.broadcast %146 : vector<1x32xf32> to vector<8x32xf32>
    %168 = arith.mulf %166, %167 : vector<8x32xf32>
    %169 = vector.broadcast %147 : vector<1x32xf32> to vector<8x32xf32>
    %170 = arith.addf %168, %169 : vector<8x32xf32>
    %cst_40 = arith.constant 0.000000e+00 : f32
    %171 = vector.broadcast %cst_40 : f32 to vector<8x32xf32>
    %172 = arith.maximumf %170, %171 : vector<8x32xf32>
    %173 = tpu.concatenate %144, %172 in 0 : vector<8x32xf32>, vector<8x32xf32> -> vector<16x32xf32>
    %174 = arith.truncf %173 : vector<16x32xf32> to vector<16x32xbf16>
    %c0_41 = arith.constant 0 : index
    %c0_42 = arith.constant 0 : index
    %175 = vector.load %arg6[%c0_41, %c0_42] : memref<32x32xbf16, #tpu.memory_space<vmem>>, vector<32x32xbf16>
    %cst_43 = arith.constant dense<0.000000e+00> : vector<16x32xf32>
    %176 = tpu.matmul %174, %175, %cst_43 {dimension_numbers = #tpu.dot_dimension_numbers<[1], [0], [0], [1], [0, 0, 1, 1], [], []>} : vector<16x32xbf16>, vector<32x32xbf16>, vector<16x32xf32> -> vector<16x32xf32>
    %177 = vector.extract_strided_slice %176 {offsets = [0, 0], sizes = [8, 32], strides = [1, 1]} : vector<16x32xf32> to vector<8x32xf32>
    %178 = vector.extract_strided_slice %176 {offsets = [8, 0], sizes = [8, 32], strides = [1, 1]} : vector<16x32xf32> to vector<8x32xf32>
    %179 = arith.subf %177, %178 : vector<8x32xf32>
    %180 = arith.mulf %179, %179 : vector<8x32xf32>
    %181 = vector.shape_cast %180 : vector<8x32xf32> to vector<1x8x32xf32>
    %cst_44 = arith.constant dense<0.000000e+00> : vector<1xf32>
    %182 = vector.multi_reduction <add>, %181, %cst_44 [1, 2] : vector<1x8x32xf32> to vector<1xf32>
    %183 = vector.shape_cast %182 : vector<1xf32> to vector<1x1x1xf32>
    %184 = vector.extract %183[0, 0, 0] : f32 from vector<1x1x1xf32>
    %cst_45 = arith.constant 3.906250e-03 : f32
    %185 = arith.mulf %184, %cst_45 : f32
    %cst_46 = arith.constant dense<0.000000e+00> : vector<32xf32>
    %186 = vector.multi_reduction <add>, %177, %cst_46 [0] : vector<8x32xf32> to vector<32xf32>
    %187 = vector.shape_cast %186 : vector<32xf32> to vector<1x32xf32>
    %cst_47 = arith.constant 8.000000e+00 : f32
    %188 = vector.broadcast %cst_47 : f32 to vector<1x32xf32>
    %189 = arith.divf %187, %188 : vector<1x32xf32>
    %190 = vector.broadcast %189 : vector<1x32xf32> to vector<8x32xf32>
    %191 = arith.subf %177, %190 : vector<8x32xf32>
    %cst_48 = arith.constant dense<0.000000e+00> : vector<32xf32>
    %192 = vector.multi_reduction <add>, %178, %cst_48 [0] : vector<8x32xf32> to vector<32xf32>
    %193 = vector.shape_cast %192 : vector<32xf32> to vector<1x32xf32>
    %cst_49 = arith.constant 8.000000e+00 : f32
    %194 = vector.broadcast %cst_49 : f32 to vector<1x32xf32>
    %195 = arith.divf %193, %194 : vector<1x32xf32>
    %196 = vector.broadcast %195 : vector<1x32xf32> to vector<8x32xf32>
    %197 = arith.subf %178, %196 : vector<8x32xf32>
    %198 = arith.mulf %191, %191 : vector<8x32xf32>
    %cst_50 = arith.constant dense<0.000000e+00> : vector<32xf32>
    %199 = vector.multi_reduction <add>, %198, %cst_50 [0] : vector<8x32xf32> to vector<32xf32>
    %200 = vector.shape_cast %199 : vector<32xf32> to vector<1x32xf32>
    %201 = arith.mulf %197, %197 : vector<8x32xf32>
    %cst_51 = arith.constant dense<0.000000e+00> : vector<32xf32>
    %202 = vector.multi_reduction <add>, %201, %cst_51 [0] : vector<8x32xf32> to vector<32xf32>
    %203 = vector.shape_cast %202 : vector<32xf32> to vector<1x32xf32>
    %cst_52 = arith.constant 0.142857149 : f32
    %204 = vector.broadcast %cst_52 : f32 to vector<1x32xf32>
    %205 = arith.mulf %200, %204 : vector<1x32xf32>
    %cst_53 = arith.constant 9.99999974E-5 : f32
    %206 = vector.broadcast %cst_53 : f32 to vector<1x32xf32>
    %207 = arith.addf %205, %206 : vector<1x32xf32>
    %208 = math.sqrt %207 : vector<1x32xf32>
    %cst_54 = arith.constant 0.142857149 : f32
    %209 = vector.broadcast %cst_54 : f32 to vector<1x32xf32>
    %210 = arith.mulf %203, %209 : vector<1x32xf32>
    %cst_55 = arith.constant 9.99999974E-5 : f32
    %211 = vector.broadcast %cst_55 : f32 to vector<1x32xf32>
    %212 = arith.addf %210, %211 : vector<1x32xf32>
    %213 = math.sqrt %212 : vector<1x32xf32>
    %cst_56 = arith.constant 1.000000e+00 : f32
    %214 = vector.broadcast %cst_56 : f32 to vector<1x32xf32>
    %215 = arith.subf %214, %208 : vector<1x32xf32>
    %cst_57 = arith.constant 0.000000e+00 : f32
    %216 = vector.broadcast %cst_57 : f32 to vector<1x32xf32>
    %217 = arith.maximumf %215, %216 : vector<1x32xf32>
    %218 = vector.shape_cast %217 : vector<1x32xf32> to vector<1x1x32xf32>
    %cst_58 = arith.constant dense<0.000000e+00> : vector<1xf32>
    %219 = vector.multi_reduction <add>, %218, %cst_58 [1, 2] : vector<1x1x32xf32> to vector<1xf32>
    %220 = vector.shape_cast %219 : vector<1xf32> to vector<1x1x1xf32>
    %221 = vector.extract %220[0, 0, 0] : f32 from vector<1x1x1xf32>
    %cst_59 = arith.constant 1.000000e+00 : f32
    %222 = vector.broadcast %cst_59 : f32 to vector<1x32xf32>
    %223 = arith.subf %222, %213 : vector<1x32xf32>
    %cst_60 = arith.constant 0.000000e+00 : f32
    %224 = vector.broadcast %cst_60 : f32 to vector<1x32xf32>
    %225 = arith.maximumf %223, %224 : vector<1x32xf32>
    %226 = vector.shape_cast %225 : vector<1x32xf32> to vector<1x1x32xf32>
    %cst_61 = arith.constant dense<0.000000e+00> : vector<1xf32>
    %227 = vector.multi_reduction <add>, %226, %cst_61 [1, 2] : vector<1x1x32xf32> to vector<1xf32>
    %228 = vector.shape_cast %227 : vector<1xf32> to vector<1x1x1xf32>
    %229 = vector.extract %228[0, 0, 0] : f32 from vector<1x1x1xf32>
    %230 = arith.addf %221, %229 : f32
    %cst_62 = arith.constant 1.562500e-02 : f32
    %231 = arith.mulf %230, %cst_62 : f32
    %cst_63 = arith.constant dense<0.000000e+00> : vector<8x8xf32>
    %232 = tpu.matmul %191, %191, %cst_63 {dimension_numbers = #tpu.dot_dimension_numbers<[1], [1], [0], [0], [0, 0, 1, 0], [], []>} : vector<8x32xf32>, vector<8x32xf32>, vector<8x8xf32> -> vector<8x8xf32>
    %cst_64 = arith.constant dense<0.000000e+00> : vector<8x8xf32>
    %233 = tpu.matmul %197, %197, %cst_64 {dimension_numbers = #tpu.dot_dimension_numbers<[1], [1], [0], [0], [0, 0, 1, 0], [], []>} : vector<8x32xf32>, vector<8x32xf32>, vector<8x8xf32> -> vector<8x8xf32>
    %234 = arith.mulf %232, %232 : vector<8x8xf32>
    %235 = vector.shape_cast %234 : vector<8x8xf32> to vector<1x8x8xf32>
    %cst_65 = arith.constant dense<0.000000e+00> : vector<1xf32>
    %236 = vector.multi_reduction <add>, %235, %cst_65 [1, 2] : vector<1x8x8xf32> to vector<1xf32>
    %237 = vector.shape_cast %236 : vector<1xf32> to vector<1x1x1xf32>
    %238 = vector.extract %237[0, 0, 0] : f32 from vector<1x1x1xf32>
    %cst_66 = arith.constant 0.0204081628 : f32
    %239 = arith.mulf %238, %cst_66 : f32
    %240 = arith.mulf %233, %233 : vector<8x8xf32>
    %241 = vector.shape_cast %240 : vector<8x8xf32> to vector<1x8x8xf32>
    %cst_67 = arith.constant dense<0.000000e+00> : vector<1xf32>
    %242 = vector.multi_reduction <add>, %241, %cst_67 [1, 2] : vector<1x8x8xf32> to vector<1xf32>
    %243 = vector.shape_cast %242 : vector<1xf32> to vector<1x1x1xf32>
    %244 = vector.extract %243[0, 0, 0] : f32 from vector<1x1x1xf32>
    %cst_68 = arith.constant 0.0204081628 : f32
    %245 = arith.mulf %244, %cst_68 : f32
    %246 = arith.mulf %200, %200 : vector<1x32xf32>
    %247 = vector.shape_cast %246 : vector<1x32xf32> to vector<1x1x32xf32>
    %cst_69 = arith.constant dense<0.000000e+00> : vector<1xf32>
    %248 = vector.multi_reduction <add>, %247, %cst_69 [1, 2] : vector<1x1x32xf32> to vector<1xf32>
    %249 = vector.shape_cast %248 : vector<1xf32> to vector<1x1x1xf32>
    %250 = vector.extract %249[0, 0, 0] : f32 from vector<1x1x1xf32>
    %cst_70 = arith.constant 0.0204081628 : f32
    %251 = arith.mulf %250, %cst_70 : f32
    %252 = arith.mulf %203, %203 : vector<1x32xf32>
    %253 = vector.shape_cast %252 : vector<1x32xf32> to vector<1x1x32xf32>
    %cst_71 = arith.constant dense<0.000000e+00> : vector<1xf32>
    %254 = vector.multi_reduction <add>, %253, %cst_71 [1, 2] : vector<1x1x32xf32> to vector<1xf32>
    %255 = vector.shape_cast %254 : vector<1xf32> to vector<1x1x1xf32>
    %256 = vector.extract %255[0, 0, 0] : f32 from vector<1x1x1xf32>
    %cst_72 = arith.constant 0.0204081628 : f32
    %257 = arith.mulf %256, %cst_72 : f32
    %258 = arith.subf %239, %251 : f32
    %259 = arith.subf %245, %257 : f32
    %260 = arith.addf %258, %259 : f32
    %cst_73 = arith.constant 3.125000e-02 : f32
    %261 = arith.mulf %260, %cst_73 : f32
    %cst_74 = arith.constant 2.500000e+01 : f32
    %262 = arith.mulf %cst_74, %185 : f32
    %cst_75 = arith.constant 2.500000e+01 : f32
    %263 = arith.mulf %cst_75, %231 : f32
    %264 = arith.addf %262, %263 : f32
    %cst_76 = arith.constant 1.000000e+00 : f32
    %265 = arith.mulf %cst_76, %261 : f32
    %266 = arith.addf %264, %265 : f32
    %c0_77 = arith.constant 0 : index
    %267 = memref.load %arg7[%c0_77] : memref<4xf32, #tpu.memory_space<smem>>
    memref.store %266, %arg7[%c0_77] : memref<4xf32, #tpu.memory_space<smem>>
    %c1 = arith.constant 1 : index
    %268 = memref.load %arg7[%c1] : memref<4xf32, #tpu.memory_space<smem>>
    memref.store %185, %arg7[%c1] : memref<4xf32, #tpu.memory_space<smem>>
    %c2 = arith.constant 2 : index
    %269 = memref.load %arg7[%c2] : memref<4xf32, #tpu.memory_space<smem>>
    memref.store %231, %arg7[%c2] : memref<4xf32, #tpu.memory_space<smem>>
    %c3 = arith.constant 3 : index
    %270 = memref.load %arg7[%c3] : memref<4xf32, #tpu.memory_space<smem>>
    memref.store %261, %arg7[%c3] : memref<4xf32, #tpu.memory_space<smem>>
    return
  }
}

</mosaic_0001>

<llo_original>
// kernel: tpu_custom_call.1
$region0: #{tpu_custom_call.1}
  #allocation0 [shape = 'u32[]', space=smem, size = 0x4, offset = 0x4, fixed_abs, tag = 'smem constant byte address 0x4 - core index']
  #allocation1 [shape = 'u32[72,128]{1,0:T(1,128)}', space=vmem, size = 0x9000, scoped, tag = 'internal scratch']
  %s0 = inlined_call_operand.hbm [shape: f32[8,16], index: 0, kind: input, shape index: {}]
  %s1 = inlined_call_operand.hbm [shape: f32[8,16], index: 1, kind: input, shape index: {}]
  %s2 = inlined_call_operand.hbm [shape: f32[10,32], index: 2, kind: input, shape index: {}]
  %s3 = inlined_call_operand.hbm [shape: bf16[16,32], index: 3, kind: input, shape index: {}]
  %s4 = inlined_call_operand.hbm [shape: bf16[16,32], index: 4, kind: input, shape index: {}]
  %s5 = inlined_call_operand.hbm [shape: bf16[32,32], index: 5, kind: input, shape index: {}]
  %s6 = inlined_call_operand.hbm [shape: bf16[32,32], index: 6, kind: input, shape index: {}]
  %s7 = inlined_call_operand.hbm [shape: f32[4], index: 7, kind: output, shape index: {}]
  %s8 = sld [smem:[#allocation0]]
  $region66: #{tpu_custom_call.1} parent=0
    _
  %s10 = ssub.s32 1, %s8
  %s11 = scalar_select 0, %s10, %s8
  $region1: #{tpu_custom_call.1} parent=0
    #allocation2 [shape = 'u8[4096]{0}', space=vmem, size = 0x1000, scoped, tag = 'input window, operand 0, single buffered']
    #allocation3 [shape = 's32[1]{0}', space=sflag, size = 0x4, scoped, tag = 'scoped memory for tpu_custom_call.1']
    #allocation4 [shape = 's32[1]{0}', space=sflag, size = 0x4, scoped, tag = 'scoped memory for tpu_custom_call.1']
    #allocation5 [shape = 'u8[4096]{0}', space=vmem, size = 0x1000, scoped, tag = 'input window, operand 1, single buffered']
    #allocation6 [shape = 's32[1]{0}', space=sflag, size = 0x4, scoped, tag = 'scoped memory for tpu_custom_call.1']
    #allocation7 [shape = 'u8[8192]{0}', space=vmem, size = 0x2000, scoped, tag = 'input window, operand 2, single buffered']
    #allocation8 [shape = 'u8[4096]{0}', space=vmem, size = 0x1000, scoped, tag = 'input window, operand 3, single buffered']
    #allocation9 [shape = 's32[1]{0}', space=sflag, size = 0x4, scoped, tag = 'scoped memory for tpu_custom_call.1']
    #allocation10 [shape = 'u8[4096]{0}', space=vmem, size = 0x1000, scoped, tag = 'input window, operand 4, single buffered']
    #allocation11 [shape = 'u8[8192]{0}', space=vmem, size = 0x2000, scoped, tag = 'input window, operand 5, single buffered']
    #allocation12 [shape = 's32[1]{0}', space=sflag, size = 0x4, scoped, tag = 'scoped memory for tpu_custom_call.1']
    #allocation13 [shape = 'u8[8192]{0}', space=vmem, size = 0x2000, scoped, tag = 'input window, operand 6, single buffered']
    #allocation14 [shape = 'u8[512]{0}', space=smem, size = 0x200, scoped, tag = 'output window, operand 0, single buffered']
    %12 = vsyncpa [#allocation3], 0
    %13 = vsyncpa [#allocation6], 0
    %14 = vsyncpa [#allocation9], 0
    %15 = vsyncpa [#allocation12], 0
    %16 = vsyncpa [#allocation4], 0
    // Predicated region
    $region2: #{tpu_custom_call.1} parent=1 // pred_check
      _
    $region3: #{tpu_custom_call.1} parent=1 // pred_check_branch
      %18 = sbr.rel (0) target = $region5
    $region4: #{tpu_custom_call.1} parent=1 // pred_region
      %20 = vsyncadd [#allocation3], 0
      %s22 = sshll.u32 %s0, 4
      %s23 = int_to_ptr.hbm [resolvable:$true] %s22
      %s24 = sshll.u32 [#allocation2], 4
      %s25 = int_to_ptr.vmem [resolvable:$true] %s24
      %27 = dma.hbm_to_vmem [thread:$0]  %s23, 128, %s25, [#allocation3]
    $region5: #{tpu_custom_call.1} parent=1 // pred_fallthru
      _
    // Predicated region
    $region6: #{tpu_custom_call.1} parent=1 // pred_check
      _
    $region7: #{tpu_custom_call.1} parent=1 // pred_check_branch
      %29 = sbr.rel (0) target = $region9
    $region8: #{tpu_custom_call.1} parent=1 // pred_region
      %31 = vsyncadd [#allocation6], 0
      %s33 = sshll.u32 %s1, 4
      %s34 = int_to_ptr.hbm [resolvable:$true] %s33
      %s35 = sshll.u32 [#allocation5], 4
      %s36 = int_to_ptr.vmem [resolvable:$true] %s35
      %38 = dma.hbm_to_vmem [thread:$0]  %s34, 128, %s36, [#allocation6]
    $region9: #{tpu_custom_call.1} parent=1 // pred_fallthru
      _
    // Predicated region
    $region10: #{tpu_custom_call.1} parent=1 // pred_check
      _
    $region11: #{tpu_custom_call.1} parent=1 // pred_check_branch
      %40 = sbr.rel (0) target = $region13
    $region12: #{tpu_custom_call.1} parent=1 // pred_region
      %42 = vsyncadd [#allocation6], 0
      %s43 = sshll.u32 %s2, 4
      %s44 = int_to_ptr.hbm [resolvable:$true] %s43
      %s45 = sshll.u32 [#allocation7], 4
      %s46 = int_to_ptr.vmem [resolvable:$true] %s45
      %51 = dma.hbm_to_vmem [thread:$0]  %s44, 256, %s46, [#allocation6], 128, 128, 8
    $region13: #{tpu_custom_call.1} parent=1 // pred_fallthru
      _
    // Predicated region
    $region14: #{tpu_custom_call.1} parent=1 // pred_check
      _
    $region15: #{tpu_custom_call.1} parent=1 // pred_check_branch
      %53 = sbr.rel (0) target = $region17
    $region16: #{tpu_custom_call.1} parent=1 // pred_region
      %55 = vsyncadd [#allocation9], 0
      %s56 = sshll.u32 %s3, 4
      %s57 = int_to_ptr.hbm [resolvable:$true] %s56
      %s58 = sshll.u32 [#allocation8], 4
      %s59 = int_to_ptr.vmem [resolvable:$true] %s58
      %64 = dma.hbm_to_vmem [thread:$0]  %s57, 128, %s59, [#allocation9], 64, 64, 4
    $region17: #{tpu_custom_call.1} parent=1 // pred_fallthru
      _
    // Predicated region
    $region18: #{tpu_custom_call.1} parent=1 // pred_check
      _
    $region19: #{tpu_custom_call.1} parent=1 // pred_check_branch
      %66 = sbr.rel (0) target = $region21
    $region20: #{tpu_custom_call.1} parent=1 // pred_region
      %68 = vsyncadd [#allocation9], 0
      %s69 = sshll.u32 %s4, 4
      %s70 = int_to_ptr.hbm [resolvable:$true] %s69
      %s71 = sshll.u32 [#allocation10], 4
      %s72 = int_to_ptr.vmem [resolvable:$true] %s71
      %77 = dma.hbm_to_vmem [thread:$0]  %s70, 128, %s72, [#allocation9], 64, 64, 4
    $region21: #{tpu_custom_call.1} parent=1 // pred_fallthru
      _
    // Predicated region
    $region22: #{tpu_custom_call.1} parent=1 // pred_check
      _
    $region23: #{tpu_custom_call.1} parent=1 // pred_check_branch
      %79 = sbr.rel (0) target = $region25
    $region24: #{tpu_custom_call.1} parent=1 // pred_region
      %81 = vsyncadd [#allocation12], 0
      %s82 = sshll.u32 %s5, 4
      %s83 = int_to_ptr.hbm [resolvable:$true] %s82
      %s84 = sshll.u32 [#allocation11], 4
      %s85 = int_to_ptr.vmem [resolvable:$true] %s84
      %90 = dma.hbm_to_vmem [thread:$0]  %s83, 256, %s85, [#allocation12], 64, 64, 4
    $region25: #{tpu_custom_call.1} parent=1 // pred_fallthru
      _
    // Predicated region
    $region26: #{tpu_custom_call.1} parent=1 // pred_check
      _
    $region27: #{tpu_custom_call.1} parent=1 // pred_check_branch
      %92 = sbr.rel (0) target = $region29
    $region28: #{tpu_custom_call.1} parent=1 // pred_region
      %94 = vsyncadd [#allocation12], 0
      %s95 = sshll.u32 %s6, 4
      %s96 = int_to_ptr.hbm [resolvable:$true] %s95
      %s97 = sshll.u32 [#allocation13], 4
      %s98 = int_to_ptr.vmem [resolvable:$true] %s97
      %103 = dma.hbm_to_vmem [thread:$0]  %s96, 256, %s98, [#allocation12], 64, 64, 4
    $region29: #{tpu_custom_call.1} parent=1 // pred_fallthru
      _
    // Predicated region
    $region30: #{tpu_custom_call.1} parent=1 // pred_check
      _
    $region31: #{tpu_custom_call.1} parent=1 // pred_check_branch
      %105 = sbr.rel (0) target = $region33
    $region32: #{tpu_custom_call.1} parent=1 // pred_region
      %107 = dma.done [#allocation3], 128
    $region33: #{tpu_custom_call.1} parent=1 // pred_fallthru
      _
    // Predicated region
    $region34: #{tpu_custom_call.1} parent=1 // pred_check
      _
    $region35: #{tpu_custom_call.1} parent=1 // pred_check_branch
      %109 = sbr.rel (0) target = $region37
    $region36: #{tpu_custom_call.1} parent=1 // pred_region
      %111 = dma.done [#allocation6], 128
    $region37: #{tpu_custom_call.1} parent=1 // pred_fallthru
      _
    // Predicated region
    $region38: #{tpu_custom_call.1} parent=1 // pred_check
      _
    $region39: #{tpu_custom_call.1} parent=1 // pred_check_branch
      %113 = sbr.rel (0) target = $region41
    $region40: #{tpu_custom_call.1} parent=1 // pred_region
      %115 = dma.done [#allocation6], 256
    $region41: #{tpu_custom_call.1} parent=1 // pred_fallthru
      _
    // Predicated region
    $region42: #{tpu_custom_call.1} parent=1 // pred_check
      _
    $region43: #{tpu_custom_call.1} parent=1 // pred_check_branch
      %117 = sbr.rel (0) target = $region45
    $region44: #{tpu_custom_call.1} parent=1 // pred_region
      %119 = dma.done [#allocation9], 128
    $region45: #{tpu_custom_call.1} parent=1 // pred_fallthru
      _
    // Predicated region
    $region46: #{tpu_custom_call.1} parent=1 // pred_check
      _
    $region47: #{tpu_custom_call.1} parent=1 // pred_check_branch
      %121 = sbr.rel (0) target = $region49
    $region48: #{tpu_custom_call.1} parent=1 // pred_region
      %123 = dma.done [#allocation9], 128
    $region49: #{tpu_custom_call.1} parent=1 // pred_fallthru
      _
    // Predicated region
    $region50: #{tpu_custom_call.1} parent=1 // pred_check
      _
    $region51: #{tpu_custom_call.1} parent=1 // pred_check_branch
      %125 = sbr.rel (0) target = $region53
    $region52: #{tpu_custom_call.1} parent=1 // pred_region
      %127 = dma.done [#allocation12], 256
    $region53: #{tpu_custom_call.1} parent=1 // pred_fallthru
      _
    // Predicated region
    $region54: #{tpu_custom_call.1} parent=1 // pred_check
      _
    $region55: #{tpu_custom_call.1} parent=1 // pred_check_branch
      %129 = sbr.rel (0) target = $region57
    $region56: #{tpu_custom_call.1} parent=1 // pred_region
      %131 = dma.done [#allocation12], 256
    $region57: #{tpu_custom_call.1} parent=1 // pred_fallthru
      _
    %v133 = vld [vmem:[#allocation2] sm:$0xff]
    %v134 = vld [vmem:[#allocation5] sm:$0xff]
    %v135 = vld [vmem:[#allocation7] sm:$0xff]
    %v136 = vld [vmem:[#allocation7 + $0x8] sm:$0x3]
    %v137 = vmul.f32 %v133, %v133
    %139 = vrot.lane.b32.xlu0 %v137, 16
    %v140 = vpop.permute.xlu0 %139
    %vm142 = vcmask 130048
    %v143 = vsel %vm142, %v133, %v140
    %vm144 = vcmask 261120
    %v145 = vsel %vm144, %v143, 0.0
    %v146 = vrot.slane %v145, 4
    %v147 = vadd.f32 %v145, %v146
    %v148 = vrot.slane %v147, 2
    %v149 = vadd.f32 %v147, %v148
    %v150 = vrot.slane %v149, 1
    %v151 = vadd.f32 %v149, %v150
    %v152 = vmul.f32 %v151, 0.125
    %v153 = vmul.f32 %v152, %v152
    %155 = vrot.lane.b32.xlu0 %v153, 16
    %v156 = vpop.permute.xlu0 %155
    %v158 = vsub.f32 %v152, %v156
    %v159 = vmax.f32 %v158, 0.0
    %v160 = vsub.f32 %v133, %v152
    %v161 = vadd.f32 %v159, 1e-05
    %v162 = vrsqrt.pop %v161
    %v163 = vmul.f32 %v162, %v161
    %v164 = vmul.f32 %v163, %v162
    %v165 = vmul.f32 0.5, %v164
    %v166 = vsub.f32 1.5, %v165
    %v167 = vmul.f32 %v162, %v166
    %vm168 = vweird.f32 %v161
    %vm169 = vweird.f32 %v162
    %vm170 = vmor %vm168, %vm169
    %v171 = vsel %vm170, %v162, %v167
    %v172 = vperm.slane %v171, 0
    %174 = vrot.lane.b32.xlu0 %v172, 112
    %v175 = vpop.permute.xlu0 %174
    %v177 = vmul.f32 %v160, %v175
    %v178 = vperm.slane %v135, 0
    %v179 = vmul.f32 %v177, %v178
    %v180 = vperm.slane %v135, 1
    %v181 = vadd.f32 %v179, %v180
    %v182 = vpack.c.bf16 %v181, %v181
    %v183 = vld [vmem:[#allocation8] sm:$0xf]
    %v184 = vld [vmem:[#allocation8 + $0x4] sm:$0xf]
    %v187 = vunpack.c.l.b16 %v183
    %v188 = vunpack.c.l.b16 %v184
    %v189 = vpack.c.b16 %v188, %v187
    %v192 = vsel %vm142, %v182, 0
    %194 = vmatpush.bf16.msra.mxu0 0
    %195 = vmatpush.bf16.msra.mxu0 0
    %196 = vmatpush.bf16.msra.mxu0 0
    %197 = vmatpush.bf16.msra.mxu0 0
    %198 = vmatpush.bf16.msra.mxu0 0
    %199 = vmatpush.bf16.msra.mxu0 0
    %200 = vmatpush.bf16.msra.mxu0 0
    %201 = vmatpush.bf16.msra.mxu0 %v189
    %202 = vmatmul.bf16.gmra.mxu0 %v192
    %v203 = vpop.f32.mrf.mxu0
    %v204 = vadd.f32 0.0, %v203
    %v205 = vpop.f32.mrf.mxu0
    %206 = vdwg.mxu0
    %v207 = vmul.f32 %v204, %v204
    %209 = vrot.lane.b32.xlu0 %v207, 32
    %v210 = vpop.permute.xlu0 %209
    %v212 = vsel %vm144, %v204, %v210
    %vm213 = vcmask 523264
    %v214 = vsel %vm213, %v212, 0.0
    %v215 = vrot.slane %v214, 4
    %v216 = vadd.f32 %v214, %v215
    %v217 = vrot.slane %v216, 2
    %v218 = vadd.f32 %v216, %v217
    %v219 = vrot.slane %v218, 1
    %v220 = vadd.f32 %v218, %v219
    %v221 = vmul.f32 %v220, 0.125
    %v222 = vmul.f32 %v221, %v221
    %224 = vrot.lane.b32.xlu0 %v222, 32
    %v225 = vpop.permute.xlu0 %224
    %v227 = vsub.f32 %v221, %v225
    %v228 = vmax.f32 %v227, 0.0
    %v229 = vsub.f32 %v204, %v221
    %v230 = vadd.f32 %v228, 1e-05
    %v231 = vrsqrt.pop %v230
    %v232 = vmul.f32 %v231, %v230
    %v233 = vmul.f32 %v232, %v231
    %v234 = vmul.f32 0.5, %v233
    %v235 = vsub.f32 1.5, %v234
    %v236 = vmul.f32 %v231, %v235
    %vm237 = vweird.f32 %v230
    %vm238 = vweird.f32 %v231
    %vm239 = vmor %vm237, %vm238
    %v240 = vsel %vm239, %v231, %v236
    %v241 = vperm.slane %v240, 0
    %243 = vrot.lane.b32.xlu0 %v241, 96
    %v244 = vpop.permute.xlu0 %243
    %v246 = vmul.f32 %v229, %v244
    %v247 = vperm.slane %v135, 4
    %v248 = vmul.f32 %v246, %v247
    %v249 = vperm.slane %v135, 5
    %v250 = vadd.f32 %v248, %v249
    %v251 = vmax.f32 %v250, 0.0
    %v252 = vmul.f32 %v134, %v134
    %254 = vrot.lane.b32.xlu0 %v252, 16
    %v255 = vpop.permute.xlu0 %254
    %v257 = vsel %vm142, %v134, %v255
    %v258 = vsel %vm144, %v257, 0.0
    %v259 = vrot.slane %v258, 4
    %v260 = vadd.f32 %v258, %v259
    %v261 = vrot.slane %v260, 2
    %v262 = vadd.f32 %v260, %v261
    %v263 = vrot.slane %v262, 1
    %v264 = vadd.f32 %v262, %v263
    %v265 = vmul.f32 %v264, 0.125
    %v266 = vmul.f32 %v265, %v265
    %268 = vrot.lane.b32.xlu0 %v266, 16
    %v269 = vpop.permute.xlu0 %268
    %v271 = vsub.f32 %v265, %v269
    %v272 = vmax.f32 %v271, 0.0
    %v273 = vsub.f32 %v134, %v265
    %v274 = vadd.f32 %v272, 1e-05
    %v275 = vrsqrt.pop %v274
    %v276 = vmul.f32 %v275, %v274
    %v277 = vmul.f32 %v276, %v275
    %v278 = vmul.f32 0.5, %v277
    %v279 = vsub.f32 1.5, %v278
    %v280 = vmul.f32 %v275, %v279
    %vm281 = vweird.f32 %v274
    %vm282 = vweird.f32 %v275
    %vm283 = vmor %vm281, %vm282
    %v284 = vsel %vm283, %v275, %v280
    %v285 = vperm.slane %v284, 0
    %287 = vrot.lane.b32.xlu0 %v285, 112
    %v288 = vpop.permute.xlu0 %287
    %v290 = vmul.f32 %v273, %v288
    %v291 = vperm.slane %v135, 2
    %v292 = vmul.f32 %v290, %v291
    %v293 = vperm.slane %v135, 3
    %v294 = vadd.f32 %v292, %v293
    %v295 = vpack.c.bf16 %v294, %v294
    %v296 = vld [vmem:[#allocation10] sm:$0xf]
    %v297 = vld [vmem:[#allocation10 + $0x4] sm:$0xf]
    %v300 = vunpack.c.l.b16 %v296
    %v301 = vunpack.c.l.b16 %v297
    %v302 = vpack.c.b16 %v301, %v300
    %v305 = vsel %vm142, %v295, 0
    %307 = vmatpush.bf16.msra.mxu0 0
    %308 = vmatpush.bf16.msra.mxu0 0
    %309 = vmatpush.bf16.msra.mxu0 0
    %310 = vmatpush.bf16.msra.mxu0 0
    %311 = vmatpush.bf16.msra.mxu0 0
    %312 = vmatpush.bf16.msra.mxu0 0
    %313 = vmatpush.bf16.msra.mxu0 0
    %314 = vmatpush.bf16.msra.mxu0 %v302
    %315 = vmatmul.bf16.gmra.mxu0 %v305
    %v316 = vpop.f32.mrf.mxu0
    %v317 = vadd.f32 0.0, %v316
    %v318 = vpop.f32.mrf.mxu0
    %319 = vdwg.mxu0
    %v320 = vmul.f32 %v317, %v317
    %322 = vrot.lane.b32.xlu0 %v320, 32
    %v323 = vpop.permute.xlu0 %322
    %v325 = vsel %vm144, %v317, %v323
    %v326 = vsel %vm213, %v325, 0.0
    %v327 = vrot.slane %v326, 4
    %v328 = vadd.f32 %v326, %v327
    %v329 = vrot.slane %v328, 2
    %v330 = vadd.f32 %v328, %v329
    %v331 = vrot.slane %v330, 1
    %v332 = vadd.f32 %v330, %v331
    %v333 = vmul.f32 %v332, 0.125
    %v334 = vmul.f32 %v333, %v333
    %336 = vrot.lane.b32.xlu0 %v334, 32
    %v337 = vpop.permute.xlu0 %336
    %v339 = vsub.f32 %v333, %v337
    %v340 = vmax.f32 %v339, 0.0
    %v341 = vsub.f32 %v317, %v333
    %v342 = vadd.f32 %v340, 1e-05
    %v343 = vrsqrt.pop %v342
    %v344 = vmul.f32 %v343, %v342
    %v345 = vmul.f32 %v344, %v343
    %v346 = vmul.f32 0.5, %v345
    %v347 = vsub.f32 1.5, %v346
    %v348 = vmul.f32 %v343, %v347
    %vm349 = vweird.f32 %v342
    %vm350 = vweird.f32 %v343
    %vm351 = vmor %vm349, %vm350
    %v352 = vsel %vm351, %v343, %v348
    %v353 = vperm.slane %v352, 0
    %355 = vrot.lane.b32.xlu0 %v353, 96
    %v356 = vpop.permute.xlu0 %355
    %v358 = vmul.f32 %v341, %v356
    %v359 = vperm.slane %v135, 6
    %v360 = vmul.f32 %v358, %v359
    %v361 = vperm.slane %v135, 7
    %v362 = vadd.f32 %v360, %v361
    %v363 = vmax.f32 %v362, 0.0
    %v364 = vpack.c.bf16 %v363, %v251
    %v365 = vld [vmem:[#allocation11] sm:$0xf]
    %v366 = vld [vmem:[#allocation11 + $0x4] sm:$0xf]
    %v367 = vld [vmem:[#allocation11 + $0x8] sm:$0xf]
    %v368 = vld [vmem:[#allocation11 + $0xc] sm:$0xf]
    %v373 = vunpack.c.l.b16 %v365
    %v374 = vunpack.c.l.b16 %v366
    %v375 = vunpack.c.l.b16 %v367
    %v376 = vunpack.c.l.b16 %v368
    %v377 = vpack.c.b16 %v374, %v373
    %v378 = vpack.c.b16 %v376, %v375
    %v382 = vsel %vm144, %v364, 0
    %384 = vmatpush.bf16.msra.mxu0 0
    %385 = vmatpush.bf16.msra.mxu0 0
    %386 = vmatpush.bf16.msra.mxu0 0
    %387 = vmatpush.bf16.msra.mxu0 0
    %388 = vmatpush.bf16.msra.mxu0 0
    %389 = vmatpush.bf16.msra.mxu0 0
    %390 = vmatpush.bf16.msra.mxu0 %v378
    %391 = vmatpush.bf16.msra.mxu0 %v377
    %392 = vmatmul.bf16.gmra.mxu0 %v382
    %v393 = vpop.f32.mrf.mxu0
    %v394 = vadd.f32 0.0, %v393
    %v395 = vpop.f32.mrf.mxu0
    %v396 = vadd.f32 0.0, %v395
    %397 = vdwg.mxu0
    %v398 = vmul.f32 %v394, %v394
    %400 = vrot.lane.b32.xlu0 %v398, 32
    %v401 = vpop.permute.xlu0 %400
    %v403 = vsel %vm144, %v394, %v401
    %v404 = vsel %vm213, %v403, 0.0
    %v405 = vrot.slane %v404, 4
    %v406 = vadd.f32 %v404, %v405
    %v407 = vrot.slane %v406, 2
    %v408 = vadd.f32 %v406, %v407
    %v409 = vrot.slane %v408, 1
    %v410 = vadd.f32 %v408, %v409
    %v411 = vmul.f32 %v410, 0.125
    %v412 = vmul.f32 %v411, %v411
    %414 = vrot.lane.b32.xlu0 %v412, 32
    %v415 = vpop.permute.xlu0 %414
    %v417 = vsub.f32 %v411, %v415
    %v418 = vmax.f32 %v417, 0.0
    %v419 = vsub.f32 %v394, %v411
    %v420 = vadd.f32 %v418, 1e-05
    %v421 = vrsqrt.pop %v420
    %v422 = vmul.f32 %v421, %v420
    %v423 = vmul.f32 %v422, %v421
    %v424 = vmul.f32 0.5, %v423
    %v425 = vsub.f32 1.5, %v424
    %v426 = vmul.f32 %v421, %v425
    %vm427 = vweird.f32 %v420
    %vm428 = vweird.f32 %v421
    %vm429 = vmor %vm427, %vm428
    %v430 = vsel %vm429, %v421, %v426
    %v431 = vperm.slane %v430, 0
    %433 = vrot.lane.b32.xlu0 %v431, 96
    %v434 = vpop.permute.xlu0 %433
    %v436 = vmul.f32 %v419, %v434
    %v437 = vperm.slane %v136, 0
    %v438 = vmul.f32 %v436, %v437
    %v439 = vperm.slane %v136, 1
    %v440 = vadd.f32 %v438, %v439
    %v441 = vmax.f32 %v440, 0.0
    %v442 = vmul.f32 %v396, %v396
    %444 = vrot.lane.b32.xlu0 %v442, 32
    %v445 = vpop.permute.xlu0 %444
    %v447 = vsel %vm144, %v396, %v445
    %v448 = vsel %vm213, %v447, 0.0
    %v449 = vrot.slane %v448, 4
    %v450 = vadd.f32 %v448, %v449
    %v451 = vrot.slane %v450, 2
    %v452 = vadd.f32 %v450, %v451
    %v453 = vrot.slane %v452, 1
    %v454 = vadd.f32 %v452, %v453
    %v455 = vmul.f32 %v454, 0.125
    %v456 = vmul.f32 %v455, %v455
    %458 = vrot.lane.b32.xlu0 %v456, 32
    %v459 = vpop.permute.xlu0 %458
    %v461 = vsub.f32 %v455, %v459
    %v462 = vmax.f32 %v461, 0.0
    %v463 = vsub.f32 %v396, %v455
    %v464 = vadd.f32 %v462, 1e-05
    %v465 = vrsqrt.pop %v464
    %v466 = vmul.f32 %v465, %v464
    %v467 = vmul.f32 %v466, %v465
    %v468 = vmul.f32 0.5, %v467
    %v469 = vsub.f32 1.5, %v468
    %v470 = vmul.f32 %v465, %v469
    %vm471 = vweird.f32 %v464
    %vm472 = vweird.f32 %v465
    %vm473 = vmor %vm471, %vm472
    %v474 = vsel %vm473, %v465, %v470
    %v475 = vperm.slane %v474, 0
    %477 = vrot.lane.b32.xlu0 %v475, 96
    %v478 = vpop.permute.xlu0 %477
    %v480 = vmul.f32 %v463, %v478
    %v481 = vmul.f32 %v480, %v437
    %v482 = vadd.f32 %v481, %v439
    %v483 = vmax.f32 %v482, 0.0
    %v484 = vpack.c.bf16 %v483, %v441
    %v485 = vld [vmem:[#allocation13] sm:$0xf]
    %v486 = vld [vmem:[#allocation13 + $0x4] sm:$0xf]
    %v487 = vld [vmem:[#allocation13 + $0x8] sm:$0xf]
    %v488 = vld [vmem:[#allocation13 + $0xc] sm:$0xf]
    %v493 = vunpack.c.l.b16 %v485
    %v494 = vunpack.c.l.b16 %v486
    %v495 = vunpack.c.l.b16 %v487
    %v496 = vunpack.c.l.b16 %v488
    %v497 = vpack.c.b16 %v494, %v493
    %v498 = vpack.c.b16 %v496, %v495
    %v502 = vsel %vm144, %v484, 0
    %504 = vmatpush.bf16.msra.mxu0 0
    %505 = vmatpush.bf16.msra.mxu0 0
    %506 = vmatpush.bf16.msra.mxu0 0
    %507 = vmatpush.bf16.msra.mxu0 0
    %508 = vmatpush.bf16.msra.mxu0 0
    %509 = vmatpush.bf16.msra.mxu0 0
    %510 = vmatpush.bf16.msra.mxu0 %v498
    %511 = vmatpush.bf16.msra.mxu0 %v497
    %512 = vmatmul.bf16.gmra.mxu0 %v502
    %v513 = vpop.f32.mrf.mxu0
    %v514 = vadd.f32 0.0, %v513
    %v515 = vpop.f32.mrf.mxu0
    %v516 = vadd.f32 0.0, %v515
    %517 = vdwg.mxu0
    %v518 = vsub.f32 %v514, %v516
    %v519 = vmul.f32 %v518, %v518
    %v520 = vsel %vm144, %v519, 0.0
    %521 = vadd.xlane.f32.xlu0 %v520
    %v522 = vpop.xlane.xlu0 %521
    %v523 = vrot.slane %v522, 4
    %v524 = vadd.f32 %v522, %v523
    %v525 = vrot.slane %v524, 2
    %v526 = vadd.f32 %v524, %v525
    %v527 = vrot.slane %v526, 1
    %v528 = vadd.f32 %v526, %v527
    %s529 = vtos %v528
    %s530 = smul.f32 %s529, 0.00390625
    %v531 = vsel %vm144, %v514, 0.0
    %v532 = vrot.slane %v531, 4
    %v533 = vadd.f32 %v531, %v532
    %v534 = vrot.slane %v533, 2
    %v535 = vadd.f32 %v533, %v534
    %v536 = vrot.slane %v535, 1
    %v537 = vadd.f32 %v535, %v536
    %v538 = vrcp.pop 8.0
    %v539 = vmul.f32 8.0, %v538
    %v540 = vsub.f32 1.0, %v539
    %v541 = vmul.f32 %v538, %v540
    %v542 = vadd.f32 %v538, %v541
    %vm543 = vweird.f32 %v538
    %v544 = vsel %vm543, %v538, %v542
    %v545 = vmul.f32 %v537, %v544
    %v546 = vsub.f32 %v514, %v545
    %v547 = vsel %vm144, %v516, 0.0
    %v548 = vrot.slane %v547, 4
    %v549 = vadd.f32 %v547, %v548
    %v550 = vrot.slane %v549, 2
    %v551 = vadd.f32 %v549, %v550
    %v552 = vrot.slane %v551, 1
    %v553 = vadd.f32 %v551, %v552
    %v554 = vmul.f32 %v553, %v544
    %v555 = vsub.f32 %v516, %v554
    %v556 = vmul.f32 %v546, %v546
    %v557 = vsel %vm144, %v556, 0.0
    %v558 = vrot.slane %v557, 4
    %v559 = vadd.f32 %v557, %v558
    %v560 = vrot.slane %v559, 2
    %v561 = vadd.f32 %v559, %v560
    %v562 = vrot.slane %v561, 1
    %v563 = vadd.f32 %v561, %v562
    %v564 = vmul.f32 %v555, %v555
    %v565 = vsel %vm144, %v564, 0.0
    %v566 = vrot.slane %v565, 4
    %v567 = vadd.f32 %v565, %v566
    %v568 = vrot.slane %v567, 2
    %v569 = vadd.f32 %v567, %v568
    %v570 = vrot.slane %v569, 1
    %v571 = vadd.f32 %v569, %v570
    %v572 = vmul.f32 %v563, 0.14285715
    %v573 = vadd.f32 %v572, 0.0001
    %v574 = vrsqrt.pop %v573
    %v575 = vmul.f32 %v574, %v573
    %v576 = vmul.f32 %v575, %v574
    %v577 = vmul.f32 0.5, %v576
    %v578 = vsub.f32 1.5, %v577
    %v579 = vmul.f32 %v574, %v578
    %v580 = vmul.f32 %v573, %v579
    %vm581 = vcmp.eq.f32.partialorder %v573, inf
    %v582 = vsel %vm581, %v573, %v580
    %vm583 = vcmp.eq.f32.partialorder %v573, 0.0
    %v584 = vand.u32 %v573, 2147483648
    %v585 = vsel %vm583, %v584, %v582
    %v586 = vmul.f32 %v571, 0.14285715
    %v587 = vadd.f32 %v586, 0.0001
    %v588 = vrsqrt.pop %v587
    %v589 = vmul.f32 %v588, %v587
    %v590 = vmul.f32 %v589, %v588
    %v591 = vmul.f32 0.5, %v590
    %v592 = vsub.f32 1.5, %v591
    %v593 = vmul.f32 %v588, %v592
    %v594 = vmul.f32 %v587, %v593
    %vm595 = vcmp.eq.f32.partialorder %v587, inf
    %v596 = vsel %vm595, %v587, %v594
    %vm597 = vcmp.eq.f32.partialorder %v587, 0.0
    %v598 = vand.u32 %v587, 2147483648
    %v599 = vsel %vm597, %v598, %v596
    %v600 = vsub.f32 1.0, %v585
    %v601 = vmax.f32 %v600, 0.0
    %vm602 = vcmask 253952
    %v603 = vsel %vm602, %v601, 0.0
    %604 = vadd.xlane.f32.xlu0 %v603
    %v605 = vpop.xlane.xlu0 %604
    %v606 = vrot.slane %v605, 4
    %v607 = vadd.f32 %v605, %v606
    %v608 = vrot.slane %v607, 2
    %v609 = vadd.f32 %v607, %v608
    %v610 = vrot.slane %v609, 1
    %v611 = vadd.f32 %v609, %v610
    %s612 = vtos %v611
    %v613 = vsub.f32 1.0, %v599
    %v614 = vmax.f32 %v613, 0.0
    %v615 = vsel %vm602, %v614, 0.0
    %616 = vadd.xlane.f32.xlu0 %v615
    %v617 = vpop.xlane.xlu0 %616
    %v618 = vrot.slane %v617, 4
    %v619 = vadd.f32 %v617, %v618
    %v620 = vrot.slane %v619, 2
    %v621 = vadd.f32 %v619, %v620
    %v622 = vrot.slane %v621, 1
    %v623 = vadd.f32 %v621, %v622
    %s624 = vtos %v623
    %s625 = sadd.f32 %s612, %s624
    %s626 = smul.f32 %s625, 0.015625
    %v628 = vsel %vm144, %v546, 0
    %630 = vmatpush.xpose.msra.mxu0 0.0
    %631 = vmatpush.xpose.msra.mxu0 0.0
    %632 = vmatpush.xpose.msra.mxu0 0.0
    %633 = vmatpush.xpose.msra.mxu0 0.0
    %634 = vmatpush.xpose.msra.mxu0 0.0
    %635 = vmatpush.xpose.msra.mxu0 0.0
    %636 = vmatpush.xpose.msra.mxu0 0.0
    %637 = vmatpush.xpose.msra.mxu0 0.0
    %638 = vmatpush.xpose.msra.mxu0 0.0
    %639 = vmatpush.xpose.msra.mxu0 0.0
    %640 = vmatpush.xpose.msra.mxu0 0.0
    %641 = vmatpush.xpose.msra.mxu0 0.0
    %642 = vmatpush.xpose.msra.mxu0 0.0
    %643 = vmatpush.xpose.msra.mxu0 0.0
    %644 = vmatpush.xpose.msra.mxu0 0.0
    %645 = vmatpush.xpose.msra.mxu0 %v628
    %646 = vmatmul.f32.gmra.mxu0 %v628
    %v647 = vpop.f32.mrf.mxu0
    %v648 = vadd.f32 0.0, %v647
    %649 = vdwg.mxu0
    %v651 = vsel %vm144, %v555, 0
    %653 = vmatpush.xpose.msra.mxu0 0.0
    %654 = vmatpush.xpose.msra.mxu0 0.0
    %655 = vmatpush.xpose.msra.mxu0 0.0
    %656 = vmatpush.xpose.msra.mxu0 0.0
    %657 = vmatpush.xpose.msra.mxu0 0.0
    %658 = vmatpush.xpose.msra.mxu0 0.0
    %659 = vmatpush.xpose.msra.mxu0 0.0
    %660 = vmatpush.xpose.msra.mxu0 0.0
    %661 = vmatpush.xpose.msra.mxu0 0.0
    %662 = vmatpush.xpose.msra.mxu0 0.0
    %663 = vmatpush.xpose.msra.mxu0 0.0
    %664 = vmatpush.xpose.msra.mxu0 0.0
    %665 = vmatpush.xpose.msra.mxu0 0.0
    %666 = vmatpush.xpose.msra.mxu0 0.0
    %667 = vmatpush.xpose.msra.mxu0 0.0
    %668 = vmatpush.xpose.msra.mxu0 %v651
    %669 = vmatmul.f32.gmra.mxu0 %v651
    %v670 = vpop.f32.mrf.mxu0
    %v671 = vadd.f32 0.0, %v670
    %672 = vdwg.mxu0
    %v673 = vmul.f32 %v648, %v648
    %vm674 = vcmask 64512
    %v675 = vsel %vm674, %v673, 0.0
    %676 = vadd.xlane.f32.xlu0 %v675
    %v677 = vpop.xlane.xlu0 %676
    %v678 = vrot.slane %v677, 4
    %v679 = vadd.f32 %v677, %v678
    %v680 = vrot.slane %v679, 2
    %v681 = vadd.f32 %v679, %v680
    %v682 = vrot.slane %v681, 1
    %v683 = vadd.f32 %v681, %v682
    %s684 = vtos %v683
    %s685 = smul.f32 %s684, 0.020408163
    %v686 = vmul.f32 %v671, %v671
    %v687 = vsel %vm674, %v686, 0.0
    %688 = vadd.xlane.f32.xlu0 %v687
    %v689 = vpop.xlane.xlu0 %688
    %v690 = vrot.slane %v689, 4
    %v691 = vadd.f32 %v689, %v690
    %v692 = vrot.slane %v691, 2
    %v693 = vadd.f32 %v691, %v692
    %v694 = vrot.slane %v693, 1
    %v695 = vadd.f32 %v693, %v694
    %s696 = vtos %v695
    %s697 = smul.f32 %s696, 0.020408163
    %v698 = vmul.f32 %v563, %v563
    %v699 = vsel %vm602, %v698, 0.0
    %700 = vadd.xlane.f32.xlu0 %v699
    %v701 = vpop.xlane.xlu0 %700
    %v702 = vrot.slane %v701, 4
    %v703 = vadd.f32 %v701, %v702
    %v704 = vrot.slane %v703, 2
    %v705 = vadd.f32 %v703, %v704
    %v706 = vrot.slane %v705, 1
    %v707 = vadd.f32 %v705, %v706
    %s708 = vtos %v707
    %s709 = smul.f32 %s708, 0.020408163
    %v710 = vmul.f32 %v571, %v571
    %v711 = vsel %vm602, %v710, 0.0
    %712 = vadd.xlane.f32.xlu0 %v711
    %v713 = vpop.xlane.xlu0 %712
    %v714 = vrot.slane %v713, 4
    %v715 = vadd.f32 %v713, %v714
    %v716 = vrot.slane %v715, 2
    %v717 = vadd.f32 %v715, %v716
    %v718 = vrot.slane %v717, 1
    %v719 = vadd.f32 %v717, %v718
    %s720 = vtos %v719
    %s721 = smul.f32 %s720, 0.020408163
    %s722 = ssub.f32 %s685, %s709
    %s723 = ssub.f32 %s697, %s721
    %s724 = sadd.f32 %s722, %s723
    %s725 = smul.f32 %s724, 0.03125
    %s726 = smul.f32 %s530, 25.0
    %s727 = smul.f32 %s626, 25.0
    %s728 = sadd.f32 %s726, %s727
    %s729 = sadd.f32 %s728, %s725
    %s730 = scalar_lea.smem [#allocation14], 0
    %731 = sst [smem:[%s730]] %s729
    %s732 = scalar_lea.smem [#allocation14], 1
    %733 = sst [smem:[%s732]] %s530
    %s734 = scalar_lea.smem [#allocation14], 2
    %735 = sst [smem:[%s734]] %s626
    %s736 = scalar_lea.smem [#allocation14], 3
    %737 = sst [smem:[%s736]] %s725
    // Predicated region
    $region58: #{tpu_custom_call.1} parent=1 // pred_check
      _
    $region59: #{tpu_custom_call.1} parent=1 // pred_check_branch
      %739 = sbr.rel (0) target = $region61
    $region60: #{tpu_custom_call.1} parent=1 // pred_region
      %741 = vsyncadd [#allocation4], 0
      %s743 = sshll.u32 %s7, 4
      %s744 = int_to_ptr.hbm [resolvable:$true] %s743
      %746 = dma.smem_to_hbm [#allocation14], 16, %s744, [#allocation4]
    $region61: #{tpu_custom_call.1} parent=1 // pred_fallthru
      _
    // Predicated region
    $region62: #{tpu_custom_call.1} parent=1 // pred_check
      _
    $region63: #{tpu_custom_call.1} parent=1 // pred_check_branch
      %748 = sbr.rel (0) target = $region65
    $region64: #{tpu_custom_call.1} parent=1 // pred_region
      %750 = dma.done [#allocation4], 16
    $region65: #{tpu_custom_call.1} parent=1 // pred_fallthru
      _
    %751 = sfence
    %752 = vsyncpa [#allocation3], 1
    %753 = vsyncpa [#allocation6], 1
    %754 = vsyncpa [#allocation9], 1
    %755 = vsyncpa [#allocation12], 1
    %756 = vsyncpa [#allocation4], 1

</llo_original>
